<compile_context>
chip_gen: v7x
topology: tpu7x:2x2x1
jax: 0.10.0
libtpu: 0.0.40
codegen_flags: <defaults>
</compile_context>

<pallas_src>
import functools
import math

import jax
import jax.numpy as jnp
from jax import lax
from jax.experimental import pallas as pl
from jax.experimental.pallas import tpu as pltpu

LN_EPS = 1e-5
VMEM_LIMIT = 32 * 1024 * 1024  # fits v5e/v6e (128 MiB) and v7x (64 MiB physical)


def mha_head_kernel(x_ref, wq_ref, bq_ref, wk_ref, bk_ref, wv_ref, bv_ref,
                    ctx_ref, *, scale):
    """One (batch, head) tile: QKV projection + softmax(QK^T * scale) @ V."""
    x = x_ref[0]                                                    # [S, E]

    q = jnp.dot(x, wq_ref[0], preferred_element_type=jnp.float32) + bq_ref[0]
    k = jnp.dot(x, wk_ref[0], preferred_element_type=jnp.float32) + bk_ref[0]
    v = jnp.dot(x, wv_ref[0], preferred_element_type=jnp.float32) + bv_ref[0]

    # Fold 1/sqrt(Dh) into q ([S, Dh]) instead of scaling scores ([S, S]).
    q = q * scale

    # scores = q @ k^T via rhs-contraction (no explicit transpose of k).
    s = lax.dot_general(q, k, dimension_numbers=(((1,), (1,)), ((), ())),
                        preferred_element_type=jnp.float32)         # [S, S]

    # Stable row softmax.  Dropout on the attention weights is identity (eval).
    m = jnp.max(s, axis=-1, keepdims=True)
    p = jnp.exp(s - m)
    denom = jnp.sum(p, axis=-1, keepdims=True)
    # pl.reciprocal(denom, approx=True) would move this onto the EUP; kept exact
    # so the fp32 validation tolerance holds.
    attn = p * pl.reciprocal(denom, approx=False)

    ctx = jnp.dot(attn, v, preferred_element_type=jnp.float32)      # [S, Dh]
    ctx_ref[0, 0] = ctx.astype(ctx_ref.dtype)


def residual_ln_kernel(x_ref, ctx_ref, g_ref, b_ref, out_ref, *, eps):
    """out = LayerNorm(4 * x + context) over the embedding dim."""
    y = 4.0 * x_ref[0] + ctx_ref[0]                                 # [S, E]
    mean = jnp.mean(y, axis=-1, keepdims=True)
    c = y - mean
    var = jnp.mean(c * c, axis=-1, keepdims=True)
    inv = lax.rsqrt(var + eps)                                      # EUP rsqrt
    out_ref[0] = (c * inv) * g_ref[...] + b_ref[...]


def multi_head_attention(x, params, *, num_heads):
    """x: [B, S, E] -> [B, S, E].  Weights use the y = x @ W + b convention."""
    B, S, E = x.shape
    H = num_heads
    Dh = E // H
    scale = 1.0 / math.sqrt(Dh)

    # Head-major weight layout: each grid step DMAs one lane-dense [E, Dh] slab
    # (block last dim == full Dh, no misaligned column slicing of [E, E]).
    def head_w(w):  # [E, E] -> [H, E, Dh]
        return w.reshape(E, H, Dh).transpose(1, 0, 2)

    def head_b(b):  # [E] -> [H, 1, Dh]
        return b.reshape(H, 1, Dh)

    # x's block index is constant in h (inner grid axis) -> fetched once per b.
    x_spec = pl.BlockSpec((1, S, E), lambda b, h: (b, 0, 0))
    w_spec = pl.BlockSpec((1, E, Dh), lambda b, h: (h, 0, 0))
    b_spec = pl.BlockSpec((1, 1, Dh), lambda b, h: (h, 0, 0))

    ctx_heads = pl.pallas_call(
        functools.partial(mha_head_kernel, scale=scale),
        out_shape=jax.ShapeDtypeStruct((B, H, S, Dh), jnp.float32),
        grid_spec=pltpu.PrefetchScalarGridSpec(
            num_scalar_prefetch=0,
            grid=(B, H),
            in_specs=[x_spec, w_spec, b_spec, w_spec, b_spec, w_spec, b_spec],
            out_specs=pl.BlockSpec((1, 1, S, Dh), lambda b, h: (b, h, 0, 0)),
        ),
        compiler_params=pltpu.CompilerParams(
            dimension_semantics=("parallel", "parallel"),
            vmem_limit_bytes=VMEM_LIMIT,
        ),
    )(
        x,
        head_w(params["wq"]), head_b(params["bq"]),
        head_w(params["wk"]), head_b(params["bk"]),
        head_w(params["wv"]), head_b(params["bv"]),
    )

    # [B, H, S, Dh] -> [B, S, E]: wrapper-side layout plumbing (matches the
    # reference transpose(1,2).view), keeping the kernel output block dense.
    ctx = ctx_heads.transpose(0, 2, 1, 3).reshape(B, S, E)

    row_spec = pl.BlockSpec((1, S, E), lambda b: (b, 0, 0))
    vec_spec = pl.BlockSpec((1, E), lambda b: (0, 0))
    out = pl.pallas_call(
        functools.partial(residual_ln_kernel, eps=LN_EPS),
        out_shape=jax.ShapeDtypeStruct((B, S, E), jnp.float32),
        grid_spec=pltpu.PrefetchScalarGridSpec(
            num_scalar_prefetch=0,
            grid=(B,),
            in_specs=[row_spec, row_spec, vec_spec, vec_spec],
            out_specs=row_spec,
        ),
        compiler_params=pltpu.CompilerParams(
            dimension_semantics=("parallel",),
            vmem_limit_bytes=VMEM_LIMIT,
        ),
    )(x, ctx, params["gamma"].reshape(1, E), params["beta"].reshape(1, E))
    return out


def init_params(key, embed_dim):
    """torch.nn.Linear-style init; weights stored transposed (x @ W + b)."""
    bound = 1.0 / math.sqrt(embed_dim)
    ks = jax.random.split(key, 6)

    def u(k, shape):
        return jax.random.uniform(k, shape, jnp.float32, minval=-bound, maxval=bound)

    return {
        "wq": u(ks[0], (embed_dim, embed_dim)),
        "bq": u(ks[1], (embed_dim,)),
        "wk": u(ks[2], (embed_dim, embed_dim)),
        "bk": u(ks[3], (embed_dim,)),
        "wv": u(ks[4], (embed_dim, embed_dim)),
        "bv": u(ks[5], (embed_dim,)),
        "gamma": jnp.ones((embed_dim,), jnp.float32),   # LayerNorm weight
        "beta": jnp.zeros((embed_dim,), jnp.float32),   # LayerNorm bias
    }


def reference_forward(x, p, *, num_heads, eps=LN_EPS):
    """Pure-JAX reference with the same (eval-mode) semantics as the PyTorch module."""
    B, S, E = x.shape
    H = num_heads
    Dh = E // H
    hp = lax.Precision.HIGHEST

    q = jnp.dot(x, p["wq"], precision=hp) + p["bq"]
    k = jnp.dot(x, p["wk"], precision=hp) + p["bk"]
    v = jnp.dot(x, p["wv"], precision=hp) + p["bv"]

    def split(t):
        return t.reshape(B, S, H, Dh).transpose(0, 2, 1, 3)     # [B, H, S, Dh]

    qh, kh, vh = split(q), split(k), split(v)
    scores = jnp.einsum("bhqd,bhkd->bhqk", qh, kh, precision=hp) / math.sqrt(Dh)
    attn = jax.nn.softmax(scores, axis=-1)
    # dropout(p=0.1): identity in eval mode
    ctx = jnp.einsum("bhqk,bhkd->bhqd", attn, vh, precision=hp)
    ctx = ctx.transpose(0, 2, 1, 3).reshape(B, S, E)

    y = 4.0 * x + ctx
    mean = y.mean(axis=-1, keepdims=True)
    var = jnp.mean((y - mean) ** 2, axis=-1, keepdims=True)
    return (y - mean) / jnp.sqrt(var + eps) * p["gamma"] + p["beta"]


if __name__ == "__main__":
    # Small deterministic problem: batch=2, seq=8, embed_dim=32, num_heads=4.
    B, S, E, H = 2, 8, 32, 4
    key = jax.random.PRNGKey(0)
    k_x, k_p = jax.random.split(key)

    x = jax.random.normal(k_x, (B, S, E), jnp.float32)
    params = init_params(k_p, E)

    out = multi_head_attention(x, params, num_heads=H)
    jax.block_until_ready(out)

    ref = reference_forward(x, params, num_heads=H)
    max_err = float(jnp.max(jnp.abs(out - ref)))
    assert jnp.allclose(out, ref, atol=1e-4, rtol=1e-4), (
        f"mismatch vs JAX reference (max abs err {max_err})")
    print("KERNEL_OK")
</pallas_src>

<mosaic_0001>
module attributes {stable_mosaic.version = 11 : i64} {
  func.func @mha_head_kernel(%arg0: i32, %arg1: i32, %arg2: memref<1x8x32xf32, #tpu.memory_space<vmem>>, %arg3: memref<1x32x8xf32, #tpu.memory_space<vmem>>, %arg4: memref<1x1x8xf32, #tpu.memory_space<vmem>>, %arg5: memref<1x32x8xf32, #tpu.memory_space<vmem>>, %arg6: memref<1x1x8xf32, #tpu.memory_space<vmem>>, %arg7: memref<1x32x8xf32, #tpu.memory_space<vmem>>, %arg8: memref<1x1x8xf32, #tpu.memory_space<vmem>>, %arg9: memref<1x1x8x8xf32, #tpu.memory_space<vmem>>) attributes {dimension_semantics = [#tpu.dimension_semantics<parallel>, #tpu.dimension_semantics<parallel>], iteration_bounds = array<i64: 2, 4>, scalar_prefetch = 0 : i64, scratch_operands = 0 : i64, tpu.core_type = #tpu.core_type<tc>, window_params = [{transform_indices = @transform_0, window_bounds = array<i64: 1, 8, 32>}, {transform_indices = @transform_1, window_bounds = array<i64: 1, 32, 8>}, {transform_indices = @transform_2, window_bounds = array<i64: 1, 1, 8>}, {transform_indices = @transform_3, window_bounds = array<i64: 1, 32, 8>}, {transform_indices = @transform_4, window_bounds = array<i64: 1, 1, 8>}, {transform_indices = @transform_5, window_bounds = array<i64: 1, 32, 8>}, {transform_indices = @transform_6, window_bounds = array<i64: 1, 1, 8>}, {transform_indices = @transform_7, window_bounds = array<i64: 1, 1, 8, 8>}]} {
    %c0 = arith.constant 0 : index
    %c0_0 = arith.constant 0 : index
    %c0_1 = arith.constant 0 : index
    %0 = vector.load %arg2[%c0, %c0_0, %c0_1] : memref<1x8x32xf32, #tpu.memory_space<vmem>>, vector<1x8x32xf32>
    %1 = vector.shape_cast %0 : vector<1x8x32xf32> to vector<8x32xf32>
    %c0_2 = arith.constant 0 : index
    %c0_3 = arith.constant 0 : index
    %c0_4 = arith.constant 0 : index
    %2 = vector.load %arg3[%c0_2, %c0_3, %c0_4] : memref<1x32x8xf32, #tpu.memory_space<vmem>>, vector<1x32x8xf32>
    %3 = vector.shape_cast %2 : vector<1x32x8xf32> to vector<32x8xf32>
    %cst = arith.constant dense<0.000000e+00> : vector<8x8xf32>
    %4 = tpu.matmul %1, %3, %cst {dimension_numbers = #tpu.dot_dimension_numbers<[1], [0], [0], [1], [0, 0, 1, 1], [], []>} : vector<8x32xf32>, vector<32x8xf32>, vector<8x8xf32> -> vector<8x8xf32>
    %c0_5 = arith.constant 0 : index
    %c0_6 = arith.constant 0 : index
    %c0_7 = arith.constant 0 : index
    %5 = vector.load %arg4[%c0_5, %c0_6, %c0_7] : memref<1x1x8xf32, #tpu.memory_space<vmem>>, vector<1x1x8xf32>
    %6 = vector.shape_cast %5 : vector<1x1x8xf32> to vector<1x8xf32>
    %7 = vector.broadcast %6 : vector<1x8xf32> to vector<8x8xf32>
    %8 = arith.addf %4, %7 : vector<8x8xf32>
    %c0_8 = arith.constant 0 : index
    %c0_9 = arith.constant 0 : index
    %c0_10 = arith.constant 0 : index
    %9 = vector.load %arg5[%c0_8, %c0_9, %c0_10] : memref<1x32x8xf32, #tpu.memory_space<vmem>>, vector<1x32x8xf32>
    %10 = vector.shape_cast %9 : vector<1x32x8xf32> to vector<32x8xf32>
    %cst_11 = arith.constant dense<0.000000e+00> : vector<8x8xf32>
    %11 = tpu.matmul %1, %10, %cst_11 {dimension_numbers = #tpu.dot_dimension_numbers<[1], [0], [0], [1], [0, 0, 1, 1], [], []>} : vector<8x32xf32>, vector<32x8xf32>, vector<8x8xf32> -> vector<8x8xf32>
    %c0_12 = arith.constant 0 : index
    %c0_13 = arith.constant 0 : index
    %c0_14 = arith.constant 0 : index
    %12 = vector.load %arg6[%c0_12, %c0_13, %c0_14] : memref<1x1x8xf32, #tpu.memory_space<vmem>>, vector<1x1x8xf32>
    %13 = vector.shape_cast %12 : vector<1x1x8xf32> to vector<1x8xf32>
    %14 = vector.broadcast %13 : vector<1x8xf32> to vector<8x8xf32>
    %15 = arith.addf %11, %14 : vector<8x8xf32>
    %c0_15 = arith.constant 0 : index
    %c0_16 = arith.constant 0 : index
    %c0_17 = arith.constant 0 : index
    %16 = vector.load %arg7[%c0_15, %c0_16, %c0_17] : memref<1x32x8xf32, #tpu.memory_space<vmem>>, vector<1x32x8xf32>
    %17 = vector.shape_cast %16 : vector<1x32x8xf32> to vector<32x8xf32>
    %cst_18 = arith.constant dense<0.000000e+00> : vector<8x8xf32>
    %18 = tpu.matmul %1, %17, %cst_18 {dimension_numbers = #tpu.dot_dimension_numbers<[1], [0], [0], [1], [0, 0, 1, 1], [], []>} : vector<8x32xf32>, vector<32x8xf32>, vector<8x8xf32> -> vector<8x8xf32>
    %c0_19 = arith.constant 0 : index
    %c0_20 = arith.constant 0 : index
    %c0_21 = arith.constant 0 : index
    %19 = vector.load %arg8[%c0_19, %c0_20, %c0_21] : memref<1x1x8xf32, #tpu.memory_space<vmem>>, vector<1x1x8xf32>
    %20 = vector.shape_cast %19 : vector<1x1x8xf32> to vector<1x8xf32>
    %21 = vector.broadcast %20 : vector<1x8xf32> to vector<8x8xf32>
    %22 = arith.addf %18, %21 : vector<8x8xf32>
    %cst_22 = arith.constant 0.353553385 : f32
    %23 = vector.broadcast %cst_22 : f32 to vector<8x8xf32>
    %24 = arith.mulf %8, %23 : vector<8x8xf32>
    %cst_23 = arith.constant dense<0.000000e+00> : vector<8x8xf32>
    %25 = tpu.matmul %24, %15, %cst_23 {dimension_numbers = #tpu.dot_dimension_numbers<[1], [1], [0], [0], [0, 0, 1, 0], [], []>} : vector<8x8xf32>, vector<8x8xf32>, vector<8x8xf32> -> vector<8x8xf32>
    %cst_24 = arith.constant dense<0xFF800000> : vector<8xf32>
    %26 = vector.multi_reduction <maximumf>, %25, %cst_24 [1] : vector<8x8xf32> to vector<8xf32>
    %27 = vector.shape_cast %26 : vector<8xf32> to vector<8x1xf32>
    %28 = vector.broadcast %27 : vector<8x1xf32> to vector<8x8xf32>
    %29 = arith.subf %25, %28 : vector<8x8xf32>
    %30 = math.exp %29 : vector<8x8xf32>
    %cst_25 = arith.constant dense<0.000000e+00> : vector<8xf32>
    %31 = vector.multi_reduction <add>, %30, %cst_25 [1] : vector<8x8xf32> to vector<8xf32>
    %32 = vector.shape_cast %31 : vector<8xf32> to vector<8x1xf32>
    %33 = tpu.reciprocal %32 : vector<8x1xf32> -> vector<8x1xf32>
    %34 = vector.broadcast %33 : vector<8x1xf32> to vector<8x8xf32>
    %35 = arith.mulf %30, %34 : vector<8x8xf32>
    %cst_26 = arith.constant dense<0.000000e+00> : vector<8x8xf32>
    %36 = tpu.matmul %35, %22, %cst_26 {dimension_numbers = #tpu.dot_dimension_numbers<[1], [0], [0], [1], [0, 0, 1, 1], [], []>} : vector<8x8xf32>, vector<8x8xf32>, vector<8x8xf32> -> vector<8x8xf32>
    %c0_27 = arith.constant 0 : index
    %c0_28 = arith.constant 0 : index
    %c0_29 = arith.constant 0 : index
    %c0_30 = arith.constant 0 : index
    %37 = vector.load %arg9[%c0_27, %c0_28, %c0_29, %c0_30] : memref<1x1x8x8xf32, #tpu.memory_space<vmem>>, vector<1x1x8x8xf32>
    %38 = vector.shape_cast %37 : vector<1x1x8x8xf32> to vector<8x8xf32>
    %39 = vector.shape_cast %36 : vector<8x8xf32> to vector<1x1x8x8xf32>
    tpu.vector_store %arg9[%c0_27, %c0_28, %c0_29, %c0_30], %39 {strides = array<i32>} : memref<1x1x8x8xf32, #tpu.memory_space<vmem>>, vector<1x1x8x8xf32>,
    return
  }
  func.func @transform_0(%arg0: i32, %arg1: i32) -> (i32, i32, i32) {
    %c0_i32 = arith.constant 0 : i32
    %c0_i32_0 = arith.constant 0 : i32
    %c0_i32_1 = arith.constant 0 : i32
    return %arg0, %c0_i32, %c0_i32_0 : i32, i32, i32
  }
  func.func @transform_1(%arg0: i32, %arg1: i32) -> (i32, i32, i32) {
    %c0_i32 = arith.constant 0 : i32
    %c0_i32_0 = arith.constant 0 : i32
    %c0_i32_1 = arith.constant 0 : i32
    return %arg1, %c0_i32, %c0_i32_0 : i32, i32, i32
  }
  func.func @transform_2(%arg0: i32, %arg1: i32) -> (i32, i32, i32) {
    %c0_i32 = arith.constant 0 : i32
    %c0_i32_0 = arith.constant 0 : i32
    %c0_i32_1 = arith.constant 0 : i32
    return %arg1, %c0_i32, %c0_i32_0 : i32, i32, i32
  }
  func.func @transform_3(%arg0: i32, %arg1: i32) -> (i32, i32, i32) {
    %c0_i32 = arith.constant 0 : i32
    %c0_i32_0 = arith.constant 0 : i32
    %c0_i32_1 = arith.constant 0 : i32
    return %arg1, %c0_i32, %c0_i32_0 : i32, i32, i32
  }
  func.func @transform_4(%arg0: i32, %arg1: i32) -> (i32, i32, i32) {
    %c0_i32 = arith.constant 0 : i32
    %c0_i32_0 = arith.constant 0 : i32
    %c0_i32_1 = arith.constant 0 : i32
    return %arg1, %c0_i32, %c0_i32_0 : i32, i32, i32
  }
  func.func @transform_5(%arg0: i32, %arg1: i32) -> (i32, i32, i32) {
    %c0_i32 = arith.constant 0 : i32
    %c0_i32_0 = arith.constant 0 : i32
    %c0_i32_1 = arith.constant 0 : i32
    return %arg1, %c0_i32, %c0_i32_0 : i32, i32, i32
  }
  func.func @transform_6(%arg0: i32, %arg1: i32) -> (i32, i32, i32) {
    %c0_i32 = arith.constant 0 : i32
    %c0_i32_0 = arith.constant 0 : i32
    %c0_i32_1 = arith.constant 0 : i32
    return %arg1, %c0_i32, %c0_i32_0 : i32, i32, i32
  }
  func.func @transform_7(%arg0: i32, %arg1: i32) -> (i32, i32, i32, i32) {
    %c0_i32 = arith.constant 0 : i32
    %c0_i32_0 = arith.constant 0 : i32
    %c0_i32_1 = arith.constant 0 : i32
    return %arg0, %arg1, %c0_i32, %c0_i32_0 : i32, i32, i32, i32
  }
}

</mosaic_0001>

<llo_original>
// kernel: tpu_custom_call.1
$region0: #{tpu_custom_call.1}
  #allocation0 [shape = 'u32[]', space=smem, size = 0x4, offset = 0x4, fixed_abs, tag = 'smem constant byte address 0x4 - core index']
  #allocation1 [shape = 'u32[144,128]{1,0:T(1,128)}', space=vmem, size = 0x12000, scoped, tag = 'internal scratch']
  %s0 = inlined_call_operand.vmem [shape: f32[2,8,32], index: 0, kind: input, shape index: {}]
  %s1 = inlined_call_operand.vmem [shape: f32[4,32,8], index: 1, kind: input, shape index: {}]
  %s2 = inlined_call_operand.vmem [shape: f32[4,1,8], index: 2, kind: input, shape index: {}]
  %s3 = inlined_call_operand.vmem [shape: f32[4,32,8], index: 3, kind: input, shape index: {}]
  %s4 = inlined_call_operand.vmem [shape: f32[4,1,8], index: 4, kind: input, shape index: {}]
  %s5 = inlined_call_operand.vmem [shape: f32[4,32,8], index: 5, kind: input, shape index: {}]
  %s6 = inlined_call_operand.vmem [shape: f32[4,1,8], index: 6, kind: input, shape index: {}]
  %s7 = inlined_call_operand.hbm [shape: f32[2,4,8,8], index: 7, kind: output, shape index: {}]
  %s8 = sld [smem:[#allocation0]]
  $region61: #{tpu_custom_call.1} parent=0
    _
  %s10 = ssub.s32 1, %s8
  %s11 = scalar_select 0, %s10, %s8
  $region1: #{tpu_custom_call.1} parent=0
    #allocation2 [shape = 'u8[8192]{0}', space=vmem, size = 0x2000, scoped, tag = 'output window, operand 0']
    #allocation3 [shape = 's32[2]{0}', space=sflag, size = 0x8, scoped, tag = 'scoped memory for tpu_custom_call.1']
    %12 = vsyncpa [#allocation3], 0
    %s13 = scalar_lea.sflag [#allocation3], 1
    %14 = vsyncpa %s13, 0
    loop: start=0, step=1, limit=10
    $region2: #{tpu_custom_call.1} parent=1 // loop_pre_header
      _
    $region3: #{tpu_custom_call.1} parent=1 // loop_header
      %s16 = sphi 0, %s20
      %p17 = scmp.ge.s32.totalorder %s16, 10
      %s23 = sphi 0, %s35
      %s24 = sphi 0, %s31
      %s25 = sphi 0, %s23
      %s26 = sphi 0, %s24
      %s27 = sphi 0, %s25
      %s28 = sphi 0, %s26
      %s38 = sphi 0, %s40
      %s41 = sphi 0, %s38
      %s42 = sphi 0, %s41
      %s58 = sphi 0, %s42
      %s64 = sphi 0, %s66
      %s67 = sphi 0, %s64
      %s68 = sphi 0, %s67
      %s84 = sphi 0, %s68
      %s90 = sphi 0, %s92
      %s93 = sphi 0, %s90
      %s94 = sphi 0, %s93
      %s110 = sphi 0, %s94
      %s116 = sphi 0, %s118
      %s119 = sphi 0, %s116
      %s120 = sphi 0, %s119
      %s136 = sphi 0, %s120
      %s142 = sphi 0, %s144
      %s145 = sphi 0, %s142
      %s146 = sphi 0, %s145
      %s162 = sphi 0, %s146
      %s168 = sphi 0, %s170
      %s171 = sphi 0, %s168
      %s172 = sphi 0, %s171
      %s188 = sphi 0, %s172
      %s194 = sphi 0, %s196
      %s197 = sphi 0, %s194
      %s198 = sphi 0, %s197
      %s214 = sphi 0, %s198
      %s222 = sphi 0, %s224
      %s225 = sphi 0, %s222
      %s226 = sphi 0, %s225
      %s242 = sphi 0, %s226
    $region4: #{tpu_custom_call.1} parent=1 // loop_header_branch
      %19 = sbr.rel (%p17) target = $region8
    $region5: #{tpu_custom_call.1} parent=1 // loop_body
      %s21 = ssub.s32 %s16, 1
      %s22 = ssub.s32 %s16, 2
      %s29 = sadd.s32 1, %s24
      %p30 = scmp.ge.s32.totalorder %s29, 4
      %s31 = scalar_select %p30, 0, %s29
      %s32 = sadd.s32 1, %s23
      %s33 = scalar_select %p30, %s32, %s23
      %p34 = scmp.ge.s32.totalorder %s33, 2
      %s35 = scalar_select %p34, 0, %s33
      %s36 = ssub.s32 %s23, %s35
      %p37 = scmp.eq.s32.totalorder %s36, 0
      %s39 = sadd.s32 %s38, 1
      %s40 = scalar_select %p37, %s38, %s39
      %p43 = pneg %p37
      %p44 = scmp.eq.s32.totalorder %s16, 7
      %p45 = por %p43, %p44
      %p46 = scmp.ne.s32.totalorder %s38, %s41
      %p47 = scmp.eq.s32.totalorder %s16, 0
      %p48 = por %p46, %p47
      %p49 = scmp.ne.s32.totalorder %s38, %s41
      %p50 = scmp.eq.s32.totalorder %s21, 7
      %p51 = por %p49, %p50
      %p52 = scmp.ne.s32.totalorder %s41, %s42
      %p53 = scmp.eq.s32.totalorder %s21, 0
      %p54 = por %p52, %p53
      %p55 = scmp.ne.s32.totalorder %s41, %s42
      %p56 = scmp.eq.s32.totalorder %s22, 7
      %p57 = por %p55, %p56
      %p59 = scmp.ne.s32.totalorder %s42, %s58
      %p60 = scmp.eq.s32.totalorder %s22, 0
      %p61 = por %p59, %p60
      %s62 = ssub.s32 %s24, %s31
      %p63 = scmp.eq.s32.totalorder %s62, 0
      %s65 = sadd.s32 %s64, 1
      %s66 = scalar_select %p63, %s64, %s65
      %p69 = pneg %p63
      %p70 = scmp.eq.s32.totalorder %s16, 7
      %p71 = por %p69, %p70
      %p72 = scmp.ne.s32.totalorder %s64, %s67
      %p73 = scmp.eq.s32.totalorder %s16, 0
      %p74 = por %p72, %p73
      %p75 = scmp.ne.s32.totalorder %s64, %s67
      %p76 = scmp.eq.s32.totalorder %s21, 7
      %p77 = por %p75, %p76
      %p78 = scmp.ne.s32.totalorder %s67, %s68
      %p79 = scmp.eq.s32.totalorder %s21, 0
      %p80 = por %p78, %p79
      %p81 = scmp.ne.s32.totalorder %s67, %s68
      %p82 = scmp.eq.s32.totalorder %s22, 7
      %p83 = por %p81, %p82
      %p85 = scmp.ne.s32.totalorder %s68, %s84
      %p86 = scmp.eq.s32.totalorder %s22, 0
      %p87 = por %p85, %p86
      %s88 = ssub.s32 %s24, %s31
      %p89 = scmp.eq.s32.totalorder %s88, 0
      %s91 = sadd.s32 %s90, 1
      %s92 = scalar_select %p89, %s90, %s91
      %p95 = pneg %p89
      %p96 = scmp.eq.s32.totalorder %s16, 7
      %p97 = por %p95, %p96
      %p98 = scmp.ne.s32.totalorder %s90, %s93
      %p99 = scmp.eq.s32.totalorder %s16, 0
      %p100 = por %p98, %p99
      %p101 = scmp.ne.s32.totalorder %s90, %s93
      %p102 = scmp.eq.s32.totalorder %s21, 7
      %p103 = por %p101, %p102
      %p104 = scmp.ne.s32.totalorder %s93, %s94
      %p105 = scmp.eq.s32.totalorder %s21, 0
      %p106 = por %p104, %p105
      %p107 = scmp.ne.s32.totalorder %s93, %s94
      %p108 = scmp.eq.s32.totalorder %s22, 7
      %p109 = por %p107, %p108
      %p111 = scmp.ne.s32.totalorder %s94, %s110
      %p112 = scmp.eq.s32.totalorder %s22, 0
      %p113 = por %p111, %p112
      %s114 = ssub.s32 %s24, %s31
      %p115 = scmp.eq.s32.totalorder %s114, 0
      %s117 = sadd.s32 %s116, 1
      %s118 = scalar_select %p115, %s116, %s117
      %p121 = pneg %p115
      %p122 = scmp.eq.s32.totalorder %s16, 7
      %p123 = por %p121, %p122
      %p124 = scmp.ne.s32.totalorder %s116, %s119
      %p125 = scmp.eq.s32.totalorder %s16, 0
      %p126 = por %p124, %p125
      %p127 = scmp.ne.s32.totalorder %s116, %s119
      %p128 = scmp.eq.s32.totalorder %s21, 7
      %p129 = por %p127, %p128
      %p130 = scmp.ne.s32.totalorder %s119, %s120
      %p131 = scmp.eq.s32.totalorder %s21, 0
      %p132 = por %p130, %p131
      %p133 = scmp.ne.s32.totalorder %s119, %s120
      %p134 = scmp.eq.s32.totalorder %s22, 7
      %p135 = por %p133, %p134
      %p137 = scmp.ne.s32.totalorder %s120, %s136
      %p138 = scmp.eq.s32.totalorder %s22, 0
      %p139 = por %p137, %p138
      %s140 = ssub.s32 %s24, %s31
      %p141 = scmp.eq.s32.totalorder %s140, 0
      %s143 = sadd.s32 %s142, 1
      %s144 = scalar_select %p141, %s142, %s143
      %p147 = pneg %p141
      %p148 = scmp.eq.s32.totalorder %s16, 7
      %p149 = por %p147, %p148
      %p150 = scmp.ne.s32.totalorder %s142, %s145
      %p151 = scmp.eq.s32.totalorder %s16, 0
      %p152 = por %p150, %p151
      %p153 = scmp.ne.s32.totalorder %s142, %s145
      %p154 = scmp.eq.s32.totalorder %s21, 7
      %p155 = por %p153, %p154
      %p156 = scmp.ne.s32.totalorder %s145, %s146
      %p157 = scmp.eq.s32.totalorder %s21, 0
      %p158 = por %p156, %p157
      %p159 = scmp.ne.s32.totalorder %s145, %s146
      %p160 = scmp.eq.s32.totalorder %s22, 7
      %p161 = por %p159, %p160
      %p163 = scmp.ne.s32.totalorder %s146, %s162
      %p164 = scmp.eq.s32.totalorder %s22, 0
      %p165 = por %p163, %p164
      %s166 = ssub.s32 %s24, %s31
      %p167 = scmp.eq.s32.totalorder %s166, 0
      %s169 = sadd.s32 %s168, 1
      %s170 = scalar_select %p167, %s168, %s169
      %p173 = pneg %p167
      %p174 = scmp.eq.s32.totalorder %s16, 7
      %p175 = por %p173, %p174
      %p176 = scmp.ne.s32.totalorder %s168, %s171
      %p177 = scmp.eq.s32.totalorder %s16, 0
      %p178 = por %p176, %p177
      %p179 = scmp.ne.s32.totalorder %s168, %s171
      %p180 = scmp.eq.s32.totalorder %s21, 7
      %p181 = por %p179, %p180
      %p182 = scmp.ne.s32.totalorder %s171, %s172
      %p183 = scmp.eq.s32.totalorder %s21, 0
      %p184 = por %p182, %p183
      %p185 = scmp.ne.s32.totalorder %s171, %s172
      %p186 = scmp.eq.s32.totalorder %s22, 7
      %p187 = por %p185, %p186
      %p189 = scmp.ne.s32.totalorder %s172, %s188
      %p190 = scmp.eq.s32.totalorder %s22, 0
      %p191 = por %p189, %p190
      %s192 = ssub.s32 %s24, %s31
      %p193 = scmp.eq.s32.totalorder %s192, 0
      %s195 = sadd.s32 %s194, 1
      %s196 = scalar_select %p193, %s194, %s195
      %p199 = pneg %p193
      %p200 = scmp.eq.s32.totalorder %s16, 7
      %p201 = por %p199, %p200
      %p202 = scmp.ne.s32.totalorder %s194, %s197
      %p203 = scmp.eq.s32.totalorder %s16, 0
      %p204 = por %p202, %p203
      %p205 = scmp.ne.s32.totalorder %s194, %s197
      %p206 = scmp.eq.s32.totalorder %s21, 7
      %p207 = por %p205, %p206
      %p208 = scmp.ne.s32.totalorder %s197, %s198
      %p209 = scmp.eq.s32.totalorder %s21, 0
      %p210 = por %p208, %p209
      %p211 = scmp.ne.s32.totalorder %s197, %s198
      %p212 = scmp.eq.s32.totalorder %s22, 7
      %p213 = por %p211, %p212
      %p215 = scmp.ne.s32.totalorder %s198, %s214
      %p216 = scmp.eq.s32.totalorder %s22, 0
      %p217 = por %p215, %p216
      %s218 = ssub.s32 %s23, %s35
      %s219 = ssub.s32 %s24, %s31
      %s220 = sor.u32 %s218, %s219
      %p221 = scmp.eq.s32.totalorder %s220, 0
      %s223 = sadd.s32 %s222, 1
      %s224 = scalar_select %p221, %s222, %s223
      %p227 = pneg %p221
      %p228 = scmp.eq.s32.totalorder %s16, 7
      %p229 = por %p227, %p228
      %p230 = scmp.ne.s32.totalorder %s222, %s225
      %p231 = scmp.eq.s32.totalorder %s16, 0
      %p232 = por %p230, %p231
      %p233 = scmp.ne.s32.totalorder %s222, %s225
      %p234 = scmp.eq.s32.totalorder %s21, 7
      %p235 = por %p233, %p234
      %p236 = scmp.ne.s32.totalorder %s225, %s226
      %p237 = scmp.eq.s32.totalorder %s21, 0
      %p238 = por %p236, %p237
      %p239 = scmp.ne.s32.totalorder %s225, %s226
      %p240 = scmp.eq.s32.totalorder %s22, 7
      %p241 = por %p239, %p240
      %p243 = scmp.ne.s32.totalorder %s226, %s242
      %p244 = scmp.eq.s32.totalorder %s22, 0
      %p245 = por %p243, %p244
      %p246 = scmp.le.s32.totalorder 1, %s16
      %p247 = scmp.lt.s32.totalorder %s16, 9
      %p248 = pnand %p246, %p247
      %p249 = pneg %p248
      // Predicated region
      $region9: #{tpu_custom_call.1} parent=5 // pred_check
        _
      $region10: #{tpu_custom_call.1} parent=5 // pred_check_branch
        %251 = sbr.rel (%p248) target = $region12
      $region11: #{tpu_custom_call.1} parent=5 // pred_region
        %s252 = ssub.s32 %s16, 1
      $region12: #{tpu_custom_call.1} parent=5 // pred_fallthru
        _
      %p253 = scmp.lt.s32.totalorder %s16, 8
      // Predicated region
      $region13: #{tpu_custom_call.1} parent=5 // pred_check
        %p254 = pneg %p253
      $region14: #{tpu_custom_call.1} parent=5 // pred_check_branch
        %256 = sbr.rel (%p254) target = $region16
      $region15: #{tpu_custom_call.1} parent=5 // pred_region
        // Predicated region
        $region17: #{tpu_custom_call.1} parent=15 // pred_check
          %p257 = pneg %p48
        $region18: #{tpu_custom_call.1} parent=15 // pred_check_branch
          %259 = sbr.rel (%p257) target = $region20
        $region19: #{tpu_custom_call.1} parent=15 // pred_region
          %p260 = scmp.lt.s32.totalorder %s23, 1
          %s261 = scalar_select %p260, %s23, 1
          %s262 = smul.addr %s261, 8
          %s263 = scalar_lea.vmem %s0, %s262
        $region20: #{tpu_custom_call.1} parent=15 // pred_fallthru
          _
        // Predicated region
        $region21: #{tpu_custom_call.1} parent=15 // pred_check
          %p264 = pneg %p74
        $region22: #{tpu_custom_call.1} parent=15 // pred_check_branch
          %266 = sbr.rel (%p264) target = $region24
        $region23: #{tpu_custom_call.1} parent=15 // pred_region
          %p267 = scmp.lt.s32.totalorder %s24, 3
          %s268 = scalar_select %p267, %s24, 3
          %s269 = smul.addr %s268, 4
          %s270 = smul.addr %s269, 8
          %s271 = scalar_lea.vmem %s1, %s270
        $region24: #{tpu_custom_call.1} parent=15 // pred_fallthru
          _
        // Predicated region
        $region25: #{tpu_custom_call.1} parent=15 // pred_check
          %p272 = pneg %p100
        $region26: #{tpu_custom_call.1} parent=15 // pred_check_branch
          %274 = sbr.rel (%p272) target = $region28
        $region27: #{tpu_custom_call.1} parent=15 // pred_region
          %p275 = scmp.lt.s32.totalorder %s24, 3
          %s276 = scalar_select %p275, %s24, 3
          %s277 = scalar_lea.vmem %s2, %s276
        $region28: #{tpu_custom_call.1} parent=15 // pred_fallthru
          _
        // Predicated region
        $region29: #{tpu_custom_call.1} parent=15 // pred_check
          %p278 = pneg %p126
        $region30: #{tpu_custom_call.1} parent=15 // pred_check_branch
          %280 = sbr.rel (%p278) target = $region32
        $region31: #{tpu_custom_call.1} parent=15 // pred_region
          %p281 = scmp.lt.s32.totalorder %s24, 3
          %s282 = scalar_select %p281, %s24, 3
          %s283 = smul.addr %s282, 4
          %s284 = smul.addr %s283, 8
          %s285 = scalar_lea.vmem %s3, %s284
        $region32: #{tpu_custom_call.1} parent=15 // pred_fallthru
          _
        // Predicated region
        $region33: #{tpu_custom_call.1} parent=15 // pred_check
          %p286 = pneg %p152
        $region34: #{tpu_custom_call.1} parent=15 // pred_check_branch
          %288 = sbr.rel (%p286) target = $region36
        $region35: #{tpu_custom_call.1} parent=15 // pred_region
          %p289 = scmp.lt.s32.totalorder %s24, 3
          %s290 = scalar_select %p289, %s24, 3
          %s291 = scalar_lea.vmem %s4, %s290
        $region36: #{tpu_custom_call.1} parent=15 // pred_fallthru
          _
        // Predicated region
        $region37: #{tpu_custom_call.1} parent=15 // pred_check
          %p292 = pneg %p178
        $region38: #{tpu_custom_call.1} parent=15 // pred_check_branch
          %294 = sbr.rel (%p292) target = $region40
        $region39: #{tpu_custom_call.1} parent=15 // pred_region
          %p295 = scmp.lt.s32.totalorder %s24, 3
          %s296 = scalar_select %p295, %s24, 3
          %s297 = smul.addr %s296, 4
          %s298 = smul.addr %s297, 8
          %s299 = scalar_lea.vmem %s5, %s298
        $region40: #{tpu_custom_call.1} parent=15 // pred_fallthru
          _
        // Predicated region
        $region41: #{tpu_custom_call.1} parent=15 // pred_check
          %p300 = pneg %p204
        $region42: #{tpu_custom_call.1} parent=15 // pred_check_branch
          %302 = sbr.rel (%p300) target = $region44
        $region43: #{tpu_custom_call.1} parent=15 // pred_region
          %p303 = scmp.lt.s32.totalorder %s24, 3
          %s304 = scalar_select %p303, %s24, 3
          %s305 = scalar_lea.vmem %s6, %s304
        $region44: #{tpu_custom_call.1} parent=15 // pred_fallthru
          _
      $region16: #{tpu_custom_call.1} parent=5 // pred_fallthru
        _
      %p306 = scmp.le.s32.totalorder 1, %s16
      %p307 = scmp.lt.s32.totalorder %s16, 9
      %p308 = pnand %p306, %p307
      %p309 = pneg %p308
      // Predicated region
      $region45: #{tpu_custom_call.1} parent=5 // pred_check
        _
      $region46: #{tpu_custom_call.1} parent=5 // pred_check_branch
        %311 = sbr.rel (%p308) target = $region48
      $region47: #{tpu_custom_call.1} parent=5 // pred_region
        %s312 = ssub.s32 %s16, 1
        %p313 = scmp.lt.s32.totalorder %s25, 1
        %s314 = scalar_select %p313, %s25, 1
        %s315 = smul.addr %s314, 8
        %s316 = scalar_lea.vmem %s0, %s315
        %p317 = pneg %p54
        %p318 = pneg %p51
        %p319 = scmp.lt.s32.totalorder %s26, 3
        %s320 = scalar_select %p319, %s26, 3
        %s321 = smul.addr %s320, 4
        %s322 = smul.addr %s321, 8
        %s323 = scalar_lea.vmem %s1, %s322
        %p324 = pneg %p80
        %p325 = pneg %p77
        %p326 = scmp.lt.s32.totalorder %s26, 3
        %s327 = scalar_select %p326, %s26, 3
        %s328 = scalar_lea.vmem %s2, %s327
        %p329 = pneg %p106
        %p330 = pneg %p103
        %p331 = scmp.lt.s32.totalorder %s26, 3
        %s332 = scalar_select %p331, %s26, 3
        %s333 = smul.addr %s332, 4
        %s334 = smul.addr %s333, 8
        %s335 = scalar_lea.vmem %s3, %s334
        %p336 = pneg %p132
        %p337 = pneg %p129
        %p338 = scmp.lt.s32.totalorder %s26, 3
        %s339 = scalar_select %p338, %s26, 3
        %s340 = scalar_lea.vmem %s4, %s339
        %p341 = pneg %p158
        %p342 = pneg %p155
        %p343 = scmp.lt.s32.totalorder %s26, 3
        %s344 = scalar_select %p343, %s26, 3
        %s345 = smul.addr %s344, 4
        %s346 = smul.addr %s345, 8
        %s347 = scalar_lea.vmem %s5, %s346
        %p348 = pneg %p184
        %p349 = pneg %p181
        %p350 = scmp.lt.s32.totalorder %s26, 3
        %s351 = scalar_select %p350, %s26, 3
        %s352 = scalar_lea.vmem %s6, %s351
        %p353 = pneg %p210
        %p354 = pneg %p207
        %p355 = pneg %p238
        %p356 = pneg %p235
        %s357 = sand.u32 %s225, 1
        %s358 = scalar_lea.sflag [#allocation3], %s357
        %s359 = sand.u32 %s225, 1
        %s360 = smul.addr %s359, 8
        %s361 = scalar_lea.vmem [#allocation2], %s360
        %p362 = scmp.lt.s32.totalorder %s25, 1
        %s363 = scalar_select %p362, %s25, 1
        %s364 = smul.addr %s363, 8
        %s365 = scalar_lea.vmem %s0, %s364
        %p366 = scmp.lt.s32.totalorder %s26, 3
        %s367 = scalar_select %p366, %s26, 3
        %s368 = smul.addr %s367, 4
        %s369 = smul.addr %s368, 8
        %s370 = scalar_lea.vmem %s1, %s369
        %p371 = scmp.lt.s32.totalorder %s26, 3
        %s372 = scalar_select %p371, %s26, 3
        %s373 = scalar_lea.vmem %s2, %s372
        %p374 = scmp.lt.s32.totalorder %s26, 3
        %s375 = scalar_select %p374, %s26, 3
        %s376 = smul.addr %s375, 4
        %s377 = smul.addr %s376, 8
        %s378 = scalar_lea.vmem %s3, %s377
        %p379 = scmp.lt.s32.totalorder %s26, 3
        %s380 = scalar_select %p379, %s26, 3
        %s381 = scalar_lea.vmem %s4, %s380
        %p382 = scmp.lt.s32.totalorder %s26, 3
        %s383 = scalar_select %p382, %s26, 3
        %s384 = smul.addr %s383, 4
        %s385 = smul.addr %s384, 8
        %s386 = scalar_lea.vmem %s5, %s385
        %p387 = scmp.lt.s32.totalorder %s26, 3
        %s388 = scalar_select %p387, %s26, 3
        %s389 = scalar_lea.vmem %s6, %s388
        %v390 = vld [vmem:[%s365] sm:$0xff]
        %v391 = vld [vmem:[%s370] sm:$0xff]
        %v392 = vld [vmem:[%s370 + $0x8] sm:$0xff]
        %v393 = vld [vmem:[%s370 + $0x10] sm:$0xff]
        %v394 = vld [vmem:[%s370 + $0x18] sm:$0xff]
        %v395 = vld [vmem:[%s373] sm:$0x1]
        %v397 = vlaneseq
        %v398 = vshrl.u32 %v397, 7
        %v399 = vsub.s32 0, %v398
        %v400 = vrot.slane %v395, %v399
        %vm402 = vcmask 261120
        %v404 = vsel %vm402, %v390, 0
        %406 = vmatprep.subr.mxu0 0.0
        %407 = vmatpush1.msra.mxu0 %v391
        %408 = vmatprep.subr.mxu0 0.0
        %409 = vmatpush1.msra.mxu0 %v392
        %410 = vmatprep.subr.mxu0 0.0
        %411 = vmatpush1.msra.mxu0 %v393
        %412 = vmatprep.subr.mxu0 0.0
        %413 = vmatpush1.msra.mxu0 %v394
        %414 = vmatprep.subr.mxu0 0.0
        %415 = vmatpush1.msra.mxu0 0.0
        %416 = vmatprep.subr.mxu0 0.0
        %417 = vmatpush1.msra.mxu0 0.0
        %418 = vmatprep.subr.mxu0 0.0
        %419 = vmatpush1.msra.mxu0 0.0
        %420 = vmatprep.subr.mxu0 0.0
        %421 = vmatpush1.msra.mxu0 0.0
        %422 = vmatprep.subr.mxu0 0.0
        %423 = vmatpush1.msra.mxu0 0.0
        %424 = vmatprep.subr.mxu0 0.0
        %425 = vmatpush1.msra.mxu0 0.0
        %426 = vmatprep.subr.mxu0 0.0
        %427 = vmatpush1.msra.mxu0 0.0
        %428 = vmatprep.subr.mxu0 0.0
        %429 = vmatpush1.msra.mxu0 0.0
        %430 = vmatprep.subr.mxu0 0.0
        %431 = vmatpush1.msra.mxu0 0.0
        %432 = vmatprep.subr.mxu0 0.0
        %433 = vmatpush1.msra.mxu0 0.0
        %434 = vmatprep.subr.mxu0 0.0
        %435 = vmatpush1.msra.mxu0 0.0
        %436 = vmatprep.subr.mxu0 0.0
        %437 = vmatpush1.msra.mxu0 0.0
        %438 = vmatprep.subr.mxu0 0.0
        %439 = vmatpush1.msra.mxu0 0.0
        %440 = vmatprep.subr.mxu0 0.0
        %441 = vmatpush1.msra.mxu0 0.0
        %442 = vmatprep.subr.mxu0 0.0
        %443 = vmatpush1.msra.mxu0 0.0
        %444 = vmatprep.subr.mxu0 0.0
        %445 = vmatpush1.msra.mxu0 0.0
        %446 = vmatprep.subr.mxu0 0.0
        %447 = vmatpush1.msra.mxu0 0.0
        %448 = vmatprep.subr.mxu0 0.0
        %449 = vmatpush1.msra.mxu0 0.0
        %450 = vmatprep.subr.mxu0 0.0
        %451 = vmatpush1.msra.mxu0 0.0
        %452 = vmatprep.subr.mxu0 0.0
        %453 = vmatpush1.msra.mxu0 0.0
        %454 = vmatprep.subr.mxu0 0.0
        %455 = vmatpush1.msra.mxu0 0.0
        %456 = vmatprep.subr.mxu0 0.0
        %457 = vmatpush1.msra.mxu0 0.0
        %458 = vmatprep.subr.mxu0 0.0
        %459 = vmatpush1.msra.mxu0 0.0
        %460 = vmatprep.subr.mxu0 0.0
        %461 = vmatpush1.msra.mxu0 0.0
        %462 = vmatprep.subr.mxu0 0.0
        %463 = vmatpush1.msra.mxu0 0.0
        %464 = vmatprep.subr.mxu0 0.0
        %465 = vmatpush1.msra.mxu0 0.0
        %466 = vmatprep.subr.mxu0 0.0
        %467 = vmatpush1.msra.mxu0 0.0
        %468 = vmatprep.subr.mxu0 0.0
        %469 = vmatpush1.msra.mxu0 0.0
        %470 = vmatprep.mubr.f32.mxu0 0.0
        %471 = vmatmul.mubr.f32.gmra.mrb[0].mxu0 %v404
        %v472 = vpop.f32.mrb[0].mxu0
        %v473 = vadd.f32 %v400, %v472
        %v474 = vpop.f32.mrb[0].mxu0
        %475 = vdwg.mxu0
        %v476 = vld [vmem:[%s378] sm:$0xff]
        %v477 = vld [vmem:[%s378 + $0x8] sm:$0xff]
        %v478 = vld [vmem:[%s378 + $0x10] sm:$0xff]
        %v479 = vld [vmem:[%s378 + $0x18] sm:$0xff]
        %v480 = vld [vmem:[%s381] sm:$0x1]
        %v482 = vlaneseq
        %v483 = vshrl.u32 %v482, 7
        %v484 = vsub.s32 0, %v483
        %v485 = vrot.slane %v480, %v484
        %487 = vmatprep.subr.mxu0 0.0
        %488 = vmatpush1.msra.mxu0 %v476
        %489 = vmatprep.subr.mxu0 0.0
        %490 = vmatpush1.msra.mxu0 %v477
        %491 = vmatprep.subr.mxu0 0.0
        %492 = vmatpush1.msra.mxu0 %v478
        %493 = vmatprep.subr.mxu0 0.0
        %494 = vmatpush1.msra.mxu0 %v479
        %495 = vmatprep.subr.mxu0 0.0
        %496 = vmatpush1.msra.mxu0 0.0
        %497 = vmatprep.subr.mxu0 0.0
        %498 = vmatpush1.msra.mxu0 0.0
        %499 = vmatprep.subr.mxu0 0.0
        %500 = vmatpush1.msra.mxu0 0.0
        %501 = vmatprep.subr.mxu0 0.0
        %502 = vmatpush1.msra.mxu0 0.0
        %503 = vmatprep.subr.mxu0 0.0
        %504 = vmatpush1.msra.mxu0 0.0
        %505 = vmatprep.subr.mxu0 0.0
        %506 = vmatpush1.msra.mxu0 0.0
        %507 = vmatprep.subr.mxu0 0.0
        %508 = vmatpush1.msra.mxu0 0.0
        %509 = vmatprep.subr.mxu0 0.0
        %510 = vmatpush1.msra.mxu0 0.0
        %511 = vmatprep.subr.mxu0 0.0
        %512 = vmatpush1.msra.mxu0 0.0
        %513 = vmatprep.subr.mxu0 0.0
        %514 = vmatpush1.msra.mxu0 0.0
        %515 = vmatprep.subr.mxu0 0.0
        %516 = vmatpush1.msra.mxu0 0.0
        %517 = vmatprep.subr.mxu0 0.0
        %518 = vmatpush1.msra.mxu0 0.0
        %519 = vmatprep.subr.mxu0 0.0
        %520 = vmatpush1.msra.mxu0 0.0
        %521 = vmatprep.subr.mxu0 0.0
        %522 = vmatpush1.msra.mxu0 0.0
        %523 = vmatprep.subr.mxu0 0.0
        %524 = vmatpush1.msra.mxu0 0.0
        %525 = vmatprep.subr.mxu0 0.0
        %526 = vmatpush1.msra.mxu0 0.0
        %527 = vmatprep.subr.mxu0 0.0
        %528 = vmatpush1.msra.mxu0 0.0
        %529 = vmatprep.subr.mxu0 0.0
        %530 = vmatpush1.msra.mxu0 0.0
        %531 = vmatprep.subr.mxu0 0.0
        %532 = vmatpush1.msra.mxu0 0.0
        %533 = vmatprep.subr.mxu0 0.0
        %534 = vmatpush1.msra.mxu0 0.0
        %535 = vmatprep.subr.mxu0 0.0
        %536 = vmatpush1.msra.mxu0 0.0
        %537 = vmatprep.subr.mxu0 0.0
        %538 = vmatpush1.msra.mxu0 0.0
        %539 = vmatprep.subr.mxu0 0.0
        %540 = vmatpush1.msra.mxu0 0.0
        %541 = vmatprep.subr.mxu0 0.0
        %542 = vmatpush1.msra.mxu0 0.0
        %543 = vmatprep.subr.mxu0 0.0
        %544 = vmatpush1.msra.mxu0 0.0
        %545 = vmatprep.subr.mxu0 0.0
        %546 = vmatpush1.msra.mxu0 0.0
        %547 = vmatprep.subr.mxu0 0.0
        %548 = vmatpush1.msra.mxu0 0.0
        %549 = vmatprep.subr.mxu0 0.0
        %550 = vmatpush1.msra.mxu0 0.0
        %551 = vmatprep.mubr.f32.mxu0 0.0
        %552 = vmatmul.mubr.f32.gmra.mrb[0].mxu0 %v404
        %v553 = vpop.f32.mrb[0].mxu0
        %v554 = vadd.f32 %v485, %v553
        %v555 = vpop.f32.mrb[0].mxu0
        %556 = vdwg.mxu0
        %v557 = vld [vmem:[%s386] sm:$0xff]
        %v558 = vld [vmem:[%s386 + $0x8] sm:$0xff]
        %v559 = vld [vmem:[%s386 + $0x10] sm:$0xff]
        %v560 = vld [vmem:[%s386 + $0x18] sm:$0xff]
        %v561 = vld [vmem:[%s389] sm:$0x1]
        %v563 = vlaneseq
        %v564 = vshrl.u32 %v563, 7
        %v565 = vsub.s32 0, %v564
        %v566 = vrot.slane %v561, %v565
        %568 = vmatprep.subr.mxu0 0.0
        %569 = vmatpush1.msra.mxu0 %v557
        %570 = vmatprep.subr.mxu0 0.0
        %571 = vmatpush1.msra.mxu0 %v558
        %572 = vmatprep.subr.mxu0 0.0
        %573 = vmatpush1.msra.mxu0 %v559
        %574 = vmatprep.subr.mxu0 0.0
        %575 = vmatpush1.msra.mxu0 %v560
        %576 = vmatprep.subr.mxu0 0.0
        %577 = vmatpush1.msra.mxu0 0.0
        %578 = vmatprep.subr.mxu0 0.0
        %579 = vmatpush1.msra.mxu0 0.0
        %580 = vmatprep.subr.mxu0 0.0
        %581 = vmatpush1.msra.mxu0 0.0
        %582 = vmatprep.subr.mxu0 0.0
        %583 = vmatpush1.msra.mxu0 0.0
        %584 = vmatprep.subr.mxu0 0.0
        %585 = vmatpush1.msra.mxu0 0.0
        %586 = vmatprep.subr.mxu0 0.0
        %587 = vmatpush1.msra.mxu0 0.0
        %588 = vmatprep.subr.mxu0 0.0
        %589 = vmatpush1.msra.mxu0 0.0
        %590 = vmatprep.subr.mxu0 0.0
        %591 = vmatpush1.msra.mxu0 0.0
        %592 = vmatprep.subr.mxu0 0.0
        %593 = vmatpush1.msra.mxu0 0.0
        %594 = vmatprep.subr.mxu0 0.0
        %595 = vmatpush1.msra.mxu0 0.0
        %596 = vmatprep.subr.mxu0 0.0
        %597 = vmatpush1.msra.mxu0 0.0
        %598 = vmatprep.subr.mxu0 0.0
        %599 = vmatpush1.msra.mxu0 0.0
        %600 = vmatprep.subr.mxu0 0.0
        %601 = vmatpush1.msra.mxu0 0.0
        %602 = vmatprep.subr.mxu0 0.0
        %603 = vmatpush1.msra.mxu0 0.0
        %604 = vmatprep.subr.mxu0 0.0
        %605 = vmatpush1.msra.mxu0 0.0
        %606 = vmatprep.subr.mxu0 0.0
        %607 = vmatpush1.msra.mxu0 0.0
        %608 = vmatprep.subr.mxu0 0.0
        %609 = vmatpush1.msra.mxu0 0.0
        %610 = vmatprep.subr.mxu0 0.0
        %611 = vmatpush1.msra.mxu0 0.0
        %612 = vmatprep.subr.mxu0 0.0
        %613 = vmatpush1.msra.mxu0 0.0
        %614 = vmatprep.subr.mxu0 0.0
        %615 = vmatpush1.msra.mxu0 0.0
        %616 = vmatprep.subr.mxu0 0.0
        %617 = vmatpush1.msra.mxu0 0.0
        %618 = vmatprep.subr.mxu0 0.0
        %619 = vmatpush1.msra.mxu0 0.0
        %620 = vmatprep.subr.mxu0 0.0
        %621 = vmatpush1.msra.mxu0 0.0
        %622 = vmatprep.subr.mxu0 0.0
        %623 = vmatpush1.msra.mxu0 0.0
        %624 = vmatprep.subr.mxu0 0.0
        %625 = vmatpush1.msra.mxu0 0.0
        %626 = vmatprep.subr.mxu0 0.0
        %627 = vmatpush1.msra.mxu0 0.0
        %628 = vmatprep.subr.mxu0 0.0
        %629 = vmatpush1.msra.mxu0 0.0
        %630 = vmatprep.subr.mxu0 0.0
        %631 = vmatpush1.msra.mxu0 0.0
        %632 = vmatprep.mubr.f32.mxu0 0.0
        %633 = vmatmul.mubr.f32.gmra.mrb[0].mxu0 %v404
        %v634 = vpop.f32.mrb[0].mxu0
        %v635 = vadd.f32 %v566, %v634
        %v636 = vpop.f32.mrb[0].mxu0
        %637 = vdwg.mxu0
        %v638 = vmul.f32 %v473, 0.35355338
        %vm639 = vcmask 64512
        %v641 = vsel %vm639, %v638, 0
        %v644 = vsel %vm639, %v554, 0
        %646 = vmatprep.subr.mxu0 0.0
        %647 = vmatpush1.xpose.msra.mxu0 %v644
        %648 = vmatprep.subr.mxu0 0.0
        %649 = vmatpush1.xpose.msra.mxu0 0.0
        %650 = vmatprep.subr.mxu0 0.0
        %651 = vmatpush1.xpose.msra.mxu0 0.0
        %652 = vmatprep.subr.mxu0 0.0
        %653 = vmatpush1.xpose.msra.mxu0 0.0
        %654 = vmatprep.subr.mxu0 0.0
        %655 = vmatpush1.xpose.msra.mxu0 0.0
        %656 = vmatprep.subr.mxu0 0.0
        %657 = vmatpush1.xpose.msra.mxu0 0.0
        %658 = vmatprep.subr.mxu0 0.0
        %659 = vmatpush1.xpose.msra.mxu0 0.0
        %660 = vmatprep.subr.mxu0 0.0
        %661 = vmatpush1.xpose.msra.mxu0 0.0
        %662 = vmatprep.subr.mxu0 0.0
        %663 = vmatpush1.xpose.msra.mxu0 0.0
        %664 = vmatprep.subr.mxu0 0.0
        %665 = vmatpush1.xpose.msra.mxu0 0.0
        %666 = vmatprep.subr.mxu0 0.0
        %667 = vmatpush1.xpose.msra.mxu0 0.0
        %668 = vmatprep.subr.mxu0 0.0
        %669 = vmatpush1.xpose.msra.mxu0 0.0
        %670 = vmatprep.subr.mxu0 0.0
        %671 = vmatpush1.xpose.msra.mxu0 0.0
        %672 = vmatprep.subr.mxu0 0.0
        %673 = vmatpush1.xpose.msra.mxu0 0.0
        %674 = vmatprep.subr.mxu0 0.0
        %675 = vmatpush1.xpose.msra.mxu0 0.0
        %676 = vmatprep.subr.mxu0 0.0
        %677 = vmatpush1.xpose.msra.mxu0 0.0
        %678 = vmatprep.subr.mxu0 0.0
        %679 = vmatpush1.xpose.msra.mxu0 0.0
        %680 = vmatprep.subr.mxu0 0.0
        %681 = vmatpush1.xpose.msra.mxu0 0.0
        %682 = vmatprep.subr.mxu0 0.0
        %683 = vmatpush1.xpose.msra.mxu0 0.0
        %684 = vmatprep.subr.mxu0 0.0
        %685 = vmatpush1.xpose.msra.mxu0 0.0
        %686 = vmatprep.subr.mxu0 0.0
        %687 = vmatpush1.xpose.msra.mxu0 0.0
        %688 = vmatprep.subr.mxu0 0.0
        %689 = vmatpush1.xpose.msra.mxu0 0.0
        %690 = vmatprep.subr.mxu0 0.0
        %691 = vmatpush1.xpose.msra.mxu0 0.0
        %692 = vmatprep.subr.mxu0 0.0
        %693 = vmatpush1.xpose.msra.mxu0 0.0
        %694 = vmatprep.subr.mxu0 0.0
        %695 = vmatpush1.xpose.msra.mxu0 0.0
        %696 = vmatprep.subr.mxu0 0.0
        %697 = vmatpush1.xpose.msra.mxu0 0.0
        %698 = vmatprep.subr.mxu0 0.0
        %699 = vmatpush1.xpose.msra.mxu0 0.0
        %700 = vmatprep.subr.mxu0 0.0
        %701 = vmatpush1.xpose.msra.mxu0 0.0
        %702 = vmatprep.subr.mxu0 0.0
        %703 = vmatpush1.xpose.msra.mxu0 0.0
        %704 = vmatprep.subr.mxu0 0.0
        %705 = vmatpush1.xpose.msra.mxu0 0.0
        %706 = vmatprep.subr.mxu0 0.0
        %707 = vmatpush1.xpose.msra.mxu0 0.0
        %708 = vmatprep.subr.mxu0 0.0
        %709 = vmatpush1.xpose.msra.mxu0 0.0
        %710 = vmatprep.mubr.f32.mxu0 0.0
        %711 = vmatmul.mubr.f32.gmra.mrb[0].mxu0 %v641
        %v712 = vpop.f32.mrb[0].mxu0
        %v713 = vadd.f32 0.0, %v712
        %v714 = vpop.f32.mrb[0].mxu0
        %715 = vdwg.mxu0
        %v716 = vsel %vm639, %v713, -inf
        %717 = vmax.xlane.f32.xlu0 %v716
        %v718 = vpop.xlane.xlu0 %717
        %v719 = vsub.f32 %v713, %v718
        %v720 = vmul.f32 %v719, 1.442695
        %v721 = vpow.pop %v720
        %v722 = vsel %vm639, %v721, 0.0
        %723 = vadd.xlane.f32.xlu0 %v722
        %v724 = vpop.xlane.xlu0 %723
        %v725 = vrcp.pop %v724
        %v726 = vmul.f32 %v721, %v725
        %v728 = vsel %vm639, %v726, 0
        %730 = vmatprep.subr.mxu0 0.0
        %731 = vmatpush1.msra.mxu0 %v635
        %732 = vmatprep.subr.mxu0 0.0
        %733 = vmatpush1.msra.mxu0 0.0
        %734 = vmatprep.subr.mxu0 0.0
        %735 = vmatpush1.msra.mxu0 0.0
        %736 = vmatprep.subr.mxu0 0.0
        %737 = vmatpush1.msra.mxu0 0.0
        %738 = vmatprep.subr.mxu0 0.0
        %739 = vmatpush1.msra.mxu0 0.0
        %740 = vmatprep.subr.mxu0 0.0
        %741 = vmatpush1.msra.mxu0 0.0
        %742 = vmatprep.subr.mxu0 0.0
        %743 = vmatpush1.msra.mxu0 0.0
        %744 = vmatprep.subr.mxu0 0.0
        %745 = vmatpush1.msra.mxu0 0.0
        %746 = vmatprep.subr.mxu0 0.0
        %747 = vmatpush1.msra.mxu0 0.0
        %748 = vmatprep.subr.mxu0 0.0
        %749 = vmatpush1.msra.mxu0 0.0
        %750 = vmatprep.subr.mxu0 0.0
        %751 = vmatpush1.msra.mxu0 0.0
        %752 = vmatprep.subr.mxu0 0.0
        %753 = vmatpush1.msra.mxu0 0.0
        %754 = vmatprep.subr.mxu0 0.0
        %755 = vmatpush1.msra.mxu0 0.0
        %756 = vmatprep.subr.mxu0 0.0
        %757 = vmatpush1.msra.mxu0 0.0
        %758 = vmatprep.subr.mxu0 0.0
        %759 = vmatpush1.msra.mxu0 0.0
        %760 = vmatprep.subr.mxu0 0.0
        %761 = vmatpush1.msra.mxu0 0.0
        %762 = vmatprep.subr.mxu0 0.0
        %763 = vmatpush1.msra.mxu0 0.0
        %764 = vmatprep.subr.mxu0 0.0
        %765 = vmatpush1.msra.mxu0 0.0
        %766 = vmatprep.subr.mxu0 0.0
        %767 = vmatpush1.msra.mxu0 0.0
        %768 = vmatprep.subr.mxu0 0.0
        %769 = vmatpush1.msra.mxu0 0.0
        %770 = vmatprep.subr.mxu0 0.0
        %771 = vmatpush1.msra.mxu0 0.0
        %772 = vmatprep.subr.mxu0 0.0
        %773 = vmatpush1.msra.mxu0 0.0
        %774 = vmatprep.subr.mxu0 0.0
        %775 = vmatpush1.msra.mxu0 0.0
        %776 = vmatprep.subr.mxu0 0.0
        %777 = vmatpush1.msra.mxu0 0.0
        %778 = vmatprep.subr.mxu0 0.0
        %779 = vmatpush1.msra.mxu0 0.0
        %780 = vmatprep.subr.mxu0 0.0
        %781 = vmatpush1.msra.mxu0 0.0
        %782 = vmatprep.subr.mxu0 0.0
        %783 = vmatpush1.msra.mxu0 0.0
        %784 = vmatprep.subr.mxu0 0.0
        %785 = vmatpush1.msra.mxu0 0.0
        %786 = vmatprep.subr.mxu0 0.0
        %787 = vmatpush1.msra.mxu0 0.0
        %788 = vmatprep.subr.mxu0 0.0
        %789 = vmatpush1.msra.mxu0 0.0
        %790 = vmatprep.subr.mxu0 0.0
        %791 = vmatpush1.msra.mxu0 0.0
        %792 = vmatprep.subr.mxu0 0.0
        %793 = vmatpush1.msra.mxu0 0.0
        %794 = vmatprep.mubr.f32.mxu0 0.0
        %795 = vmatmul.mubr.f32.gmra.mrb[0].mxu0 %v728
        %v796 = vpop.f32.mrb[0].mxu0
        %v797 = vadd.f32 0.0, %v796
        %v798 = vpop.f32.mrb[0].mxu0
        %799 = vdwg.mxu0
        %800 = vst.msk [vmem:[%s361] sm:$0xff] %vm639, %v797
        %s801 = sand.u32 %s225, 1
        %s802 = scalar_lea.sflag [#allocation3], %s801
        %s803 = sand.u32 %s225, 1
        %s804 = smul.addr %s803, 8
        %s805 = scalar_lea.vmem [#allocation2], %s804
        // Predicated region
        $region49: #{tpu_custom_call.1} parent=47 // pred_check
          %p806 = pneg %p235
        $region50: #{tpu_custom_call.1} parent=47 // pred_check_branch
          %808 = sbr.rel (%p806) target = $region52
        $region51: #{tpu_custom_call.1} parent=47 // pred_region
          %s810 = ssub.s32 128, 128
          %811 = vsyncadd %s802, %s810
          %s812 = smul.addr %s25, 4
          %s813 = sadd.s32 %s26, %s812
          %s814 = smul.addr %s813, 128
          %s815 = scalar_lea.hbm %s7, %s814
          %s817 = sshll.u32 %s805, 4
          %s818 = int_to_ptr.vmem [resolvable:$true] %s817
          %820 = dma.vmem_to_hbm [thread:$0]  %s818, 128, %s815, %s802
        $region52: #{tpu_custom_call.1} parent=47 // pred_fallthru
          _
      $region48: #{tpu_custom_call.1} parent=5 // pred_fallthru
        _
      %p821 = scmp.le.s32.totalorder 2, %s16
      // Predicated region
      $region53: #{tpu_custom_call.1} parent=5 // pred_check
        %p822 = pneg %p821
      $region54: #{tpu_custom_call.1} parent=5 // pred_check_branch
        %824 = sbr.rel (%p822) target = $region56
      $region55: #{tpu_custom_call.1} parent=5 // pred_region
        %s825 = ssub.s32 %s16, 2
        // Predicated region
        $region57: #{tpu_custom_call.1} parent=55 // pred_check
          %p826 = pneg %p241
        $region58: #{tpu_custom_call.1} parent=55 // pred_check_branch
          %828 = sbr.rel (%p826) target = $region60
        $region59: #{tpu_custom_call.1} parent=55 // pred_region
          %s829 = sand.u32 %s226, 1
          %s830 = scalar_lea.sflag [#allocation3], %s829
          %s831 = sand.u32 %s226, 1
          %s832 = smul.addr %s831, 8
          %s833 = scalar_lea.vmem [#allocation2], %s832
          %834 = dma.done %s830, 128
        $region60: #{tpu_custom_call.1} parent=55 // pred_fallthru
          _
      $region56: #{tpu_custom_call.1} parent=5 // pred_fallthru
        _
    $region6: #{tpu_custom_call.1} parent=1 // loop_footer
      %s20 = sadd.s32 1, %s16
    $region7: #{tpu_custom_call.1} parent=1 // loop_footer_branch
      %15 = sbr.rel target = $region3
    $region8: #{tpu_custom_call.1} parent=1 // loop_exit
      _
    %835 = vsyncpa [#allocation3], 1
    %s836 = scalar_lea.sflag [#allocation3], 1
    %837 = vsyncpa %s836, 1

</llo_original>
